<compile_context>
chip_gen: v7x
topology: tpu7x:2x2x1
jax: 0.10.0
libtpu: 0.0.40
codegen_flags: <defaults>
</compile_context>

<pallas_src>
import numpy as np
import jax
import jax.numpy as jnp
from jax.experimental import pallas as pl
from jax.experimental.pallas import tpu as pltpu


# ----------------------------------------------------------------------------
# Static sizes (true dims, no 128 padding)
# ----------------------------------------------------------------------------
NUM_NODES = 32                 # full feature table / global node-id columns
FEATURE_DIM = 16
HIDDEN_DIM = 8
EMB_DIM = 8
OUT_W = EMB_DIM + HIDDEN_DIM   # packed output width (16)
N_NBR_SAMPLES1 = 3
N_NBR_SAMPLES2 = 3

N_PAD = 8                      # batch rows (len(node_list), multiple of 8)
STACK_ROWS = NUM_NODES + N_PAD # stacked agg1 mask rows (40)

_BN_EPS = 1e-5
BF16 = jnp.bfloat16
F32 = jnp.float32


# ----------------------------------------------------------------------------
# The single fused Pallas kernel (whole eval-mode forward, 6 matmuls)
# ----------------------------------------------------------------------------
def mean_model_kernel(feat_ref, mask1s_ref, mask2_ref,
                      wa1_ref, ba1_ref, we1_ref, be1_ref,
                      wa2_ref, ba2_ref, we2_ref, be2_ref,
                      out_ref):
    def fc(x, w_ref, b_ref):
        # bf16 MXU inputs, f32 accumulation; bias add + tanh in f32 (v5e-safe).
        y = jnp.dot(x.astype(BF16), w_ref[...], preferred_element_type=F32)
        return jnp.tanh(y + b_ref[...])

    # agg1 FC applied ONCE to the full feature table (row-wise op -> identical
    # to applying it only to the sampled unique nodes in eval mode).
    h_all = fc(feat_ref[...], wa1_ref, ba1_ref)                     # (32, 8)

    # Stacked agg1 aggregation: rows [0:32] = enc2-branch (global node rows),
    # rows [32:40] = enc1-branch (node_list rows).  One matmul for both.
    a_stack = jnp.dot(mask1s_ref[...], h_all.astype(BF16),
                      preferred_element_type=F32)                   # (40, 8)

    # Stacked enc1 FC.  we1 is pre-placed into output cols [0:H] (feeds agg2)
    # and [EMB:EMB+H] (lands directly in the packed output's enc1 half).
    e1 = fc(a_stack, we1_ref, be1_ref)                              # (40, 16)

    # enc2 branch: agg2 over the enc1 embeddings at global node rows.
    s2 = fc(e1[:NUM_NODES, :HIDDEN_DIM], wa2_ref, ba2_ref)          # (32, 8)
    a2 = jnp.dot(mask2_ref[...], s2.astype(BF16),
                 preferred_element_type=F32)                        # (8, 8)
    e2 = fc(a2, we2_ref, be2_ref)       # (8, 16): cols [0:EMB] = enc2 output

    # Packed output: cols [0:EMB] from enc2, cols [EMB:] from enc1(node_list).
    col = jax.lax.broadcasted_iota(jnp.int32, (N_PAD, OUT_W), 1)
    out_ref[...] = jnp.where(col < EMB_DIM, e2, e1[NUM_NODES:, :])


def _vmem_spec():
    return pl.BlockSpec(memory_space=pltpu.MemorySpace.VMEM)


@jax.jit
def fused_forward(feats, mask1s, mask2, kernel_params):
    return pl.pallas_call(
        mean_model_kernel,
        out_shape=jax.ShapeDtypeStruct((N_PAD, OUT_W), jnp.float32),
        in_specs=[_vmem_spec() for _ in range(3 + 8)],
        out_specs=_vmem_spec(),
    )(feats, mask1s, mask2, *kernel_params)


# ----------------------------------------------------------------------------
# Parameter init: Linear (xavier weight, torch-default bias) with BatchNorm1d
# (eval) folded in.  Fold uses actual BN stats if provided.
# ----------------------------------------------------------------------------
def fold_linear_bn(key, in_dim, out_dim,
                   gamma=None, beta=None, running_mean=None, running_var=None):
    kw, kb = jax.random.split(key)
    bound_w = float(np.sqrt(6.0 / (in_dim + out_dim)))        # xavier_uniform_
    w = jax.random.uniform(kw, (out_dim, in_dim), F32, -bound_w, bound_w)
    bound_b = 1.0 / float(np.sqrt(in_dim))                    # torch Linear default
    b = jax.random.uniform(kb, (out_dim,), F32, -bound_b, bound_b)
    gamma = jnp.ones((out_dim,), F32) if gamma is None else gamma
    beta = jnp.zeros((out_dim,), F32) if beta is None else beta
    mean = jnp.zeros((out_dim,), F32) if running_mean is None else running_mean
    var = jnp.ones((out_dim,), F32) if running_var is None else running_var
    scale = gamma / jnp.sqrt(var + _BN_EPS)                   # gamma/sqrt(var+eps)
    w_fold = (w.T * scale).astype(BF16)                       # (in, out) bf16
    b_fold = (beta + (b - mean) * scale).reshape(1, out_dim).astype(F32)
    return w_fold, b_fold


def make_params(key):
    k1, k2, k3, k4 = jax.random.split(key, 4)
    wa1, ba1 = fold_linear_bn(k1, FEATURE_DIM, HIDDEN_DIM)
    we1, be1 = fold_linear_bn(k2, HIDDEN_DIM, HIDDEN_DIM)
    wa2, ba2 = fold_linear_bn(k3, HIDDEN_DIM, HIDDEN_DIM)
    we2, be2 = fold_linear_bn(k4, HIDDEN_DIM, EMB_DIM)
    natural = {"agg1": (wa1, ba1), "enc1": (we1, be1),
               "agg2": (wa2, ba2), "enc2": (we2, be2)}
    # Kernel layout (valid because EMB_DIM == HIDDEN_DIM == 8, ranges disjoint):
    #  * enc1 weights duplicated at cols [0:H] (feeds agg2) and [EMB:EMB+H]
    #    (packed-output enc1 half).
    #  * enc2 weights placed at cols [0:EMB]; remaining cols zero (masked by
    #    the in-kernel jnp.where).
    we1_k = (jnp.zeros((HIDDEN_DIM, OUT_W), BF16)
             .at[:, :HIDDEN_DIM].set(we1)
             .at[:, EMB_DIM:EMB_DIM + HIDDEN_DIM].set(we1))
    be1_k = (jnp.zeros((1, OUT_W), F32)
             .at[:, :HIDDEN_DIM].set(be1)
             .at[:, EMB_DIM:EMB_DIM + HIDDEN_DIM].set(be1))
    we2_k = jnp.zeros((HIDDEN_DIM, OUT_W), BF16).at[:, :EMB_DIM].set(we2)
    be2_k = jnp.zeros((1, OUT_W), F32).at[:, :EMB_DIM].set(be2)
    kernel_params = (wa1, ba1, we1_k, be1_k, wa2, ba2, we2_k, be2_k)
    return natural, kernel_params


# ----------------------------------------------------------------------------
# Host-side graph sampling + row-normalized masks with GLOBAL node-id columns
# (matches MeanAggregator.forward semantics; stays in numpy on purpose)
# ----------------------------------------------------------------------------
def fill_sample_rows(mask, rows_and_nodes, g, n_samples, rng):
    for r, node in rows_and_nodes:
        nbrs = sorted(g[node])
        if len(nbrs) >= n_samples:
            chosen = list(rng.choice(nbrs, n_samples, replace=False)) + [node]
        else:
            chosen = list(nbrs) + [node]
        for alter in chosen:
            mask[r, int(alter)] = 1.0
    # row-normalize on host; padded / unused rows stay all-zero
    rowsum = mask.sum(axis=1, keepdims=True)
    np.divide(mask, rowsum, out=mask, where=rowsum > 0)
    return mask


def build_inputs(node_list, g, n1, n2, rng):
    # same rng consumption order as the PyTorch eval path:
    # agg2(node_list) -> agg1(u2) -> agg1(node_list)
    mask2 = fill_sample_rows(np.zeros((N_PAD, NUM_NODES), np.float32),
                             list(enumerate(node_list)), g, n2, rng)
    u2 = [int(c) for c in np.flatnonzero(mask2.sum(axis=0) > 0)]
    # agg1 rows for the enc2 branch live at GLOBAL node-id row positions so
    # mask2's global columns line up with them.
    mask1 = fill_sample_rows(np.zeros((NUM_NODES, NUM_NODES), np.float32),
                             [(n, n) for n in u2], g, n1, rng)
    mask1b = fill_sample_rows(np.zeros((N_PAD, NUM_NODES), np.float32),
                              list(enumerate(node_list)), g, n1, rng)
    mask1_stack = np.vstack([mask1, mask1b])          # (40, 32)
    return mask1_stack, mask2


def mean_model_forward(node_list, g, feats_bf16, kernel_params, n1, n2, rng):
    assert len(node_list) <= N_PAD
    mask1s_np, mask2_np = build_inputs(node_list, g, n1, n2, rng)
    mask1s = jnp.asarray(mask1s_np, BF16)
    mask2 = jnp.asarray(mask2_np, BF16)
    out = fused_forward(feats_bf16, mask1s, mask2, kernel_params)
    n = len(node_list)
    out = out if n == N_PAD else out[:n]
    return out, (mask1s, mask2)


# ----------------------------------------------------------------------------
# Pure-XLA reference (same bf16 inputs / folded params, natural weight shapes)
# ----------------------------------------------------------------------------
def reference_forward(feats_bf16, mask1s, mask2, natural_params, n):
    def fc(x, wb):
        y = jnp.dot(x.astype(BF16), wb[0], preferred_element_type=F32)
        return jnp.tanh(y + wb[1])
    h = fc(feats_bf16, natural_params["agg1"])
    a = jnp.dot(mask1s, h.astype(BF16), preferred_element_type=F32)     # (40, 8)
    e1 = fc(a, natural_params["enc1"])
    s2 = fc(e1[:NUM_NODES], natural_params["agg2"])
    a2 = jnp.dot(mask2, s2.astype(BF16), preferred_element_type=F32)    # (8, 8)
    e2 = fc(a2, natural_params["enc2"])
    e1_nl = e1[NUM_NODES:]
    return np.concatenate([np.asarray(e2)[:n], np.asarray(e1_nl)[:n]], axis=1)


# ----------------------------------------------------------------------------
# main
# ----------------------------------------------------------------------------
if __name__ == "__main__":
    key = jax.random.PRNGKey(0)
    k_feat, k_params = jax.random.split(key)

    # node features (the `features` tensor of MeanModel), stored bf16
    features = jax.random.normal(k_feat, (NUM_NODES, FEATURE_DIM), F32)
    feats_bf16 = features.astype(BF16)

    # small deterministic graph: ring + chords, 4 neighbors per node
    g = {
        i: {(i - 1) % NUM_NODES, (i + 1) % NUM_NODES,
            (i - 5) % NUM_NODES, (i + 5) % NUM_NODES}
        for i in range(NUM_NODES)
    }

    natural_params, kernel_params = make_params(k_params)

    node_list = list(range(0, 16, 2))           # batch of 8 nodes
    rng = np.random.default_rng(0)              # deterministic neighbor sampling

    out, (mask1s, mask2) = mean_model_forward(node_list, g, feats_bf16,
                                              kernel_params,
                                              N_NBR_SAMPLES1, N_NBR_SAMPLES2, rng)
    out = jax.block_until_ready(out)

    assert out.shape == (len(node_list), EMB_DIM + HIDDEN_DIM), out.shape
    assert bool(jnp.all(jnp.isfinite(out)))

    # numerical sanity check against a plain-XLA reference on identical inputs
    ref = reference_forward(feats_bf16, mask1s, mask2, natural_params,
                            len(node_list))
    np.testing.assert_allclose(np.asarray(out), ref, rtol=2e-2, atol=2e-2)

    print("KERNEL_OK")
</pallas_src>

<mosaic_0001>
module attributes {stable_mosaic.version = 11 : i64} {
  func.func @mean_model_kernel(%arg0: memref<32x16xbf16, #tpu.memory_space<vmem>>, %arg1: memref<40x32xbf16, #tpu.memory_space<vmem>>, %arg2: memref<8x32xbf16, #tpu.memory_space<vmem>>, %arg3: memref<16x8xbf16, #tpu.memory_space<vmem>>, %arg4: memref<1x8xf32, #tpu.memory_space<vmem>>, %arg5: memref<8x16xbf16, #tpu.memory_space<vmem>>, %arg6: memref<1x16xf32, #tpu.memory_space<vmem>>, %arg7: memref<8x8xbf16, #tpu.memory_space<vmem>>, %arg8: memref<1x8xf32, #tpu.memory_space<vmem>>, %arg9: memref<8x16xbf16, #tpu.memory_space<vmem>>, %arg10: memref<1x16xf32, #tpu.memory_space<vmem>>, %arg11: memref<8x16xf32, #tpu.memory_space<vmem>>) attributes {dimension_semantics = [], scalar_prefetch = 0 : i64, scratch_operands = 0 : i64, tpu.core_type = #tpu.core_type<tc>} {
    %c0 = arith.constant 0 : index
    %c0_0 = arith.constant 0 : index
    %0 = vector.load %arg0[%c0, %c0_0] : memref<32x16xbf16, #tpu.memory_space<vmem>>, vector<32x16xbf16>
    %c0_1 = arith.constant 0 : index
    %c0_2 = arith.constant 0 : index
    %1 = vector.load %arg3[%c0_1, %c0_2] : memref<16x8xbf16, #tpu.memory_space<vmem>>, vector<16x8xbf16>
    %cst = arith.constant dense<0.000000e+00> : vector<32x8xf32>
    %2 = tpu.matmul %0, %1, %cst {dimension_numbers = #tpu.dot_dimension_numbers<[1], [0], [0], [1], [0, 0, 1, 1], [], []>} : vector<32x16xbf16>, vector<16x8xbf16>, vector<32x8xf32> -> vector<32x8xf32>
    %c0_3 = arith.constant 0 : index
    %c0_4 = arith.constant 0 : index
    %3 = vector.load %arg4[%c0_3, %c0_4] : memref<1x8xf32, #tpu.memory_space<vmem>>, vector<1x8xf32>
    %4 = vector.broadcast %3 : vector<1x8xf32> to vector<32x8xf32>
    %5 = arith.addf %2, %4 : vector<32x8xf32>
    %6 = math.tanh %5 : vector<32x8xf32>
    %c0_5 = arith.constant 0 : index
    %c0_6 = arith.constant 0 : index
    %7 = vector.load %arg1[%c0_5, %c0_6] : memref<40x32xbf16, #tpu.memory_space<vmem>>, vector<40x32xbf16>
    %8 = arith.truncf %6 : vector<32x8xf32> to vector<32x8xbf16>
    %cst_7 = arith.constant dense<0.000000e+00> : vector<40x8xf32>
    %9 = tpu.matmul %7, %8, %cst_7 {dimension_numbers = #tpu.dot_dimension_numbers<[1], [0], [0], [1], [0, 0, 1, 1], [], []>} : vector<40x32xbf16>, vector<32x8xbf16>, vector<40x8xf32> -> vector<40x8xf32>
    %10 = arith.truncf %9 : vector<40x8xf32> to vector<40x8xbf16>
    %c0_8 = arith.constant 0 : index
    %c0_9 = arith.constant 0 : index
    %11 = vector.load %arg5[%c0_8, %c0_9] : memref<8x16xbf16, #tpu.memory_space<vmem>>, vector<8x16xbf16>
    %cst_10 = arith.constant dense<0.000000e+00> : vector<40x16xf32>
    %12 = tpu.matmul %10, %11, %cst_10 {dimension_numbers = #tpu.dot_dimension_numbers<[1], [0], [0], [1], [0, 0, 1, 1], [], []>} : vector<40x8xbf16>, vector<8x16xbf16>, vector<40x16xf32> -> vector<40x16xf32>
    %c0_11 = arith.constant 0 : index
    %c0_12 = arith.constant 0 : index
    %13 = vector.load %arg6[%c0_11, %c0_12] : memref<1x16xf32, #tpu.memory_space<vmem>>, vector<1x16xf32>
    %14 = vector.broadcast %13 : vector<1x16xf32> to vector<40x16xf32>
    %15 = arith.addf %12, %14 : vector<40x16xf32>
    %16 = math.tanh %15 : vector<40x16xf32>
    %17 = vector.extract_strided_slice %16 {offsets = [0, 0], sizes = [32, 8], strides = [1, 1]} : vector<40x16xf32> to vector<32x8xf32>
    %18 = arith.truncf %17 : vector<32x8xf32> to vector<32x8xbf16>
    %c0_13 = arith.constant 0 : index
    %c0_14 = arith.constant 0 : index
    %19 = vector.load %arg7[%c0_13, %c0_14] : memref<8x8xbf16, #tpu.memory_space<vmem>>, vector<8x8xbf16>
    %cst_15 = arith.constant dense<0.000000e+00> : vector<32x8xf32>
    %20 = tpu.matmul %18, %19, %cst_15 {dimension_numbers = #tpu.dot_dimension_numbers<[1], [0], [0], [1], [0, 0, 1, 1], [], []>} : vector<32x8xbf16>, vector<8x8xbf16>, vector<32x8xf32> -> vector<32x8xf32>
    %c0_16 = arith.constant 0 : index
    %c0_17 = arith.constant 0 : index
    %21 = vector.load %arg8[%c0_16, %c0_17] : memref<1x8xf32, #tpu.memory_space<vmem>>, vector<1x8xf32>
    %22 = vector.broadcast %21 : vector<1x8xf32> to vector<32x8xf32>
    %23 = arith.addf %20, %22 : vector<32x8xf32>
    %24 = math.tanh %23 : vector<32x8xf32>
    %c0_18 = arith.constant 0 : index
    %c0_19 = arith.constant 0 : index
    %25 = vector.load %arg2[%c0_18, %c0_19] : memref<8x32xbf16, #tpu.memory_space<vmem>>, vector<8x32xbf16>
    %26 = arith.truncf %24 : vector<32x8xf32> to vector<32x8xbf16>
    %cst_20 = arith.constant dense<0.000000e+00> : vector<8x8xf32>
    %27 = tpu.matmul %25, %26, %cst_20 {dimension_numbers = #tpu.dot_dimension_numbers<[1], [0], [0], [1], [0, 0, 1, 1], [], []>} : vector<8x32xbf16>, vector<32x8xbf16>, vector<8x8xf32> -> vector<8x8xf32>
    %28 = arith.truncf %27 : vector<8x8xf32> to vector<8x8xbf16>
    %c0_21 = arith.constant 0 : index
    %c0_22 = arith.constant 0 : index
    %29 = vector.load %arg9[%c0_21, %c0_22] : memref<8x16xbf16, #tpu.memory_space<vmem>>, vector<8x16xbf16>
    %cst_23 = arith.constant dense<0.000000e+00> : vector<8x16xf32>
    %30 = tpu.matmul %28, %29, %cst_23 {dimension_numbers = #tpu.dot_dimension_numbers<[1], [0], [0], [1], [0, 0, 1, 1], [], []>} : vector<8x8xbf16>, vector<8x16xbf16>, vector<8x16xf32> -> vector<8x16xf32>
    %c0_24 = arith.constant 0 : index
    %c0_25 = arith.constant 0 : index
    %31 = vector.load %arg10[%c0_24, %c0_25] : memref<1x16xf32, #tpu.memory_space<vmem>>, vector<1x16xf32>
    %32 = vector.broadcast %31 : vector<1x16xf32> to vector<8x16xf32>
    %33 = arith.addf %30, %32 : vector<8x16xf32>
    %34 = math.tanh %33 : vector<8x16xf32>
    %35 = tpu.iota {dimensions = array<i32: 1>} : vector<8x16xi32>
    %c8_i32 = arith.constant 8 : i32
    %36 = vector.broadcast %c8_i32 : i32 to vector<8x16xi32>
    %37 = arith.cmpi slt, %35, %36 : vector<8x16xi32>
    %38 = vector.extract_strided_slice %16 {offsets = [32, 0], sizes = [8, 16], strides = [1, 1]} : vector<40x16xf32> to vector<8x16xf32>
    %39 = arith.select %37, %34, %38 : vector<8x16xi1>, vector<8x16xf32>
    %c0_26 = arith.constant 0 : index
    %c0_27 = arith.constant 0 : index
    %40 = vector.load %arg11[%c0_26, %c0_27] : memref<8x16xf32, #tpu.memory_space<vmem>>, vector<8x16xf32>
    tpu.vector_store %arg11[%c0_26, %c0_27], %39 {strides = array<i32>} : memref<8x16xf32, #tpu.memory_space<vmem>>, vector<8x16xf32>,
    return
  }
}

</mosaic_0001>

<llo_original>
// kernel: fused_forward.1
$region0: #{fused_forward.1}
  #allocation0 [shape = 'u32[]', space=smem, size = 0x4, offset = 0x4, fixed_abs, tag = 'smem constant byte address 0x4 - core index']
  #allocation1 [shape = 'u32[144,128]{1,0:T(1,128)}', space=vmem, size = 0x12000, scoped, tag = 'internal scratch']
  %s0 = inlined_call_operand.vmem [shape: bf16[32,16], index: 0, kind: input, shape index: {}]
  %s1 = inlined_call_operand.vmem [shape: bf16[40,32], index: 1, kind: input, shape index: {}]
  %s2 = inlined_call_operand.vmem [shape: bf16[8,32], index: 2, kind: input, shape index: {}]
  %s3 = inlined_call_operand.vmem [shape: bf16[16,8], index: 3, kind: input, shape index: {}]
  %s4 = inlined_call_operand.vmem [shape: f32[1,8], index: 4, kind: input, shape index: {}]
  %s5 = inlined_call_operand.vmem [shape: bf16[8,16], index: 5, kind: input, shape index: {}]
  %s6 = inlined_call_operand.vmem [shape: f32[1,16], index: 6, kind: input, shape index: {}]
  %s7 = inlined_call_operand.vmem [shape: bf16[8,8], index: 7, kind: input, shape index: {}]
  %s8 = inlined_call_operand.vmem [shape: f32[1,8], index: 8, kind: input, shape index: {}]
  %s9 = inlined_call_operand.vmem [shape: bf16[8,16], index: 9, kind: input, shape index: {}]
  %s10 = inlined_call_operand.vmem [shape: f32[1,16], index: 10, kind: input, shape index: {}]
  %s11 = inlined_call_operand.hbm [shape: f32[8,16], index: 11, kind: output, shape index: {}]
  %s12 = sld [smem:[#allocation0]]
  $region54: #{fused_forward.1} parent=0
    _
  %s14 = ssub.s32 1, %s12
  %s15 = scalar_select 0, %s14, %s12
  $region1: #{fused_forward.1} parent=0
    #allocation2 [shape = 'u8[4096]{0}', space=vmem, size = 0x1000, scoped, tag = 'output window, operand 0, single buffered']
    #allocation3 [shape = 's32[1]{0}', space=sflag, size = 0x4, scoped, tag = 'scoped memory for fused_forward.1']
    %16 = vsyncpa [#allocation3], 0
    // Predicated region
    $region2: #{fused_forward.1} parent=1 // pred_check
      _
    $region3: #{fused_forward.1} parent=1 // pred_check_branch
      %18 = sbr.rel (0) target = $region5
    $region4: #{fused_forward.1} parent=1 // pred_region
      _
    $region5: #{fused_forward.1} parent=1 // pred_fallthru
      _
    // Predicated region
    $region6: #{fused_forward.1} parent=1 // pred_check
      _
    $region7: #{fused_forward.1} parent=1 // pred_check_branch
      %20 = sbr.rel (0) target = $region9
    $region8: #{fused_forward.1} parent=1 // pred_region
      _
    $region9: #{fused_forward.1} parent=1 // pred_fallthru
      _
    // Predicated region
    $region10: #{fused_forward.1} parent=1 // pred_check
      _
    $region11: #{fused_forward.1} parent=1 // pred_check_branch
      %22 = sbr.rel (0) target = $region13
    $region12: #{fused_forward.1} parent=1 // pred_region
      _
    $region13: #{fused_forward.1} parent=1 // pred_fallthru
      _
    // Predicated region
    $region14: #{fused_forward.1} parent=1 // pred_check
      _
    $region15: #{fused_forward.1} parent=1 // pred_check_branch
      %24 = sbr.rel (0) target = $region17
    $region16: #{fused_forward.1} parent=1 // pred_region
      _
    $region17: #{fused_forward.1} parent=1 // pred_fallthru
      _
    // Predicated region
    $region18: #{fused_forward.1} parent=1 // pred_check
      _
    $region19: #{fused_forward.1} parent=1 // pred_check_branch
      %26 = sbr.rel (0) target = $region21
    $region20: #{fused_forward.1} parent=1 // pred_region
      _
    $region21: #{fused_forward.1} parent=1 // pred_fallthru
      _
    // Predicated region
    $region22: #{fused_forward.1} parent=1 // pred_check
      _
    $region23: #{fused_forward.1} parent=1 // pred_check_branch
      %28 = sbr.rel (0) target = $region25
    $region24: #{fused_forward.1} parent=1 // pred_region
      _
    $region25: #{fused_forward.1} parent=1 // pred_fallthru
      _
    // Predicated region
    $region26: #{fused_forward.1} parent=1 // pred_check
      _
    $region27: #{fused_forward.1} parent=1 // pred_check_branch
      %30 = sbr.rel (0) target = $region29
    $region28: #{fused_forward.1} parent=1 // pred_region
      _
    $region29: #{fused_forward.1} parent=1 // pred_fallthru
      _
    // Predicated region
    $region30: #{fused_forward.1} parent=1 // pred_check
      _
    $region31: #{fused_forward.1} parent=1 // pred_check_branch
      %32 = sbr.rel (0) target = $region33
    $region32: #{fused_forward.1} parent=1 // pred_region
      _
    $region33: #{fused_forward.1} parent=1 // pred_fallthru
      _
    // Predicated region
    $region34: #{fused_forward.1} parent=1 // pred_check
      _
    $region35: #{fused_forward.1} parent=1 // pred_check_branch
      %34 = sbr.rel (0) target = $region37
    $region36: #{fused_forward.1} parent=1 // pred_region
      _
    $region37: #{fused_forward.1} parent=1 // pred_fallthru
      _
    // Predicated region
    $region38: #{fused_forward.1} parent=1 // pred_check
      _
    $region39: #{fused_forward.1} parent=1 // pred_check_branch
      %36 = sbr.rel (0) target = $region41
    $region40: #{fused_forward.1} parent=1 // pred_region
      _
    $region41: #{fused_forward.1} parent=1 // pred_fallthru
      _
    // Predicated region
    $region42: #{fused_forward.1} parent=1 // pred_check
      _
    $region43: #{fused_forward.1} parent=1 // pred_check_branch
      %38 = sbr.rel (0) target = $region45
    $region44: #{fused_forward.1} parent=1 // pred_region
      _
    $region45: #{fused_forward.1} parent=1 // pred_fallthru
      _
    %v40 = vld [vmem:[%s0] sm:$0xf]
    %v41 = vld [vmem:[%s0 + $0x4] sm:$0xf]
    %v42 = vld [vmem:[%s0 + $0x8] sm:$0xf]
    %v43 = vld [vmem:[%s0 + $0xc] sm:$0xf]
    %v44 = vld [vmem:[%s3] sm:$0xf]
    %v45 = vld [vmem:[%s3 + $0x4] sm:$0xf]
    %v46 = vld [vmem:[%s4] sm:$0x1]
    %v48 = vlaneseq
    %v49 = vshrl.u32 %v48, 7
    %v50 = vsub.s32 0, %v49
    %v51 = vrot.slane %v46, %v50
    %v57 = vunpack.c.l.b16 %v40
    %v58 = vunpack.c.l.b16 %v41
    %v59 = vunpack.c.l.b16 %v42
    %v60 = vunpack.c.l.b16 %v43
    %v61 = vpack.c.b16 %v58, %v57
    %v62 = vpack.c.b16 %v60, %v59
    %v65 = vunpack.c.l.b16 %v44
    %v66 = vunpack.c.l.b16 %v45
    %v67 = vpack.c.b16 %v66, %v65
    %vm69 = vcmask 130048
    %v71 = vsel %vm69, %v61, 0
    %v74 = vsel %vm69, %v62, 0
    %76 = vmatprep.subr.bf16.mxu0 0
    %77 = vmatpush1.bf16.msra.mxu0 %v67
    %78 = vmatprep.subr.bf16.mxu0 0
    %79 = vmatpush1.bf16.msra.mxu0 0
    %80 = vmatprep.subr.bf16.mxu0 0
    %81 = vmatpush1.bf16.msra.mxu0 0
    %82 = vmatprep.subr.bf16.mxu0 0
    %83 = vmatpush1.bf16.msra.mxu0 0
    %84 = vmatprep.subr.bf16.mxu0 0
    %85 = vmatpush1.bf16.msra.mxu0 0
    %86 = vmatprep.subr.bf16.mxu0 0
    %87 = vmatpush1.bf16.msra.mxu0 0
    %88 = vmatprep.subr.bf16.mxu0 0
    %89 = vmatpush1.bf16.msra.mxu0 0
    %90 = vmatprep.subr.bf16.mxu0 0
    %91 = vmatpush1.bf16.msra.mxu0 0
    %92 = vmatprep.subr.bf16.mxu0 0
    %93 = vmatpush1.bf16.msra.mxu0 0
    %94 = vmatprep.subr.bf16.mxu0 0
    %95 = vmatpush1.bf16.msra.mxu0 0
    %96 = vmatprep.subr.bf16.mxu0 0
    %97 = vmatpush1.bf16.msra.mxu0 0
    %98 = vmatprep.subr.bf16.mxu0 0
    %99 = vmatpush1.bf16.msra.mxu0 0
    %100 = vmatprep.subr.bf16.mxu0 0
    %101 = vmatpush1.bf16.msra.mxu0 0
    %102 = vmatprep.subr.bf16.mxu0 0
    %103 = vmatpush1.bf16.msra.mxu0 0
    %104 = vmatprep.subr.bf16.mxu0 0
    %105 = vmatpush1.bf16.msra.mxu0 0
    %106 = vmatprep.subr.bf16.mxu0 0
    %107 = vmatpush1.bf16.msra.mxu0 0
    %108 = vmatprep.mubr.bf16.mxu0 0
    %109 = vmatmul.mubr.bf16.gmra.mrb[0].mxu0 %v71
    %v110 = vpop.f32.mrb[0].mxu0
    %v111 = vadd.f32 %v51, %v110
    %v112 = vpop.f32.mrb[0].mxu0
    %v113 = vpop.f32.mrb[0].mxu0
    %v114 = vadd.f32 %v51, %v113
    %v115 = vpop.f32.mrb[0].mxu0
    %116 = vmatprep.mubr.bf16.mxu0 0
    %117 = vmatmul.mubr.bf16.gmra.mrb[0].mxu0 %v74
    %v118 = vpop.f32.mrb[0].mxu0
    %v119 = vadd.f32 %v51, %v118
    %v120 = vpop.f32.mrb[0].mxu0
    %v121 = vpop.f32.mrb[0].mxu0
    %v122 = vadd.f32 %v51, %v121
    %v123 = vpop.f32.mrb[0].mxu0
    %124 = vdwg.mxu0
    %v125 = vtanh.pop %v111
    %v126 = vtanh.pop %v114
    %v127 = vtanh.pop %v119
    %v128 = vtanh.pop %v122
    %v129 = vld [vmem:[%s1] sm:$0xf]
    %v130 = vld [vmem:[%s1 + $0x4] sm:$0xf]
    %v131 = vld [vmem:[%s1 + $0x8] sm:$0xf]
    %v132 = vld [vmem:[%s1 + $0xc] sm:$0xf]
    %v133 = vld [vmem:[%s1 + $0x10] sm:$0xf]
    %v134 = vpack.c.bf16 %v126, %v125
    %v135 = vpack.c.bf16 %v128, %v127
    %v141 = vunpack.c.l.b16 %v129
    %v142 = vunpack.c.l.b16 %v130
    %v143 = vunpack.c.l.b16 %v131
    %v144 = vunpack.c.l.b16 %v132
    %v145 = vunpack.c.l.b16 %v133
    %v146 = vpack.c.b16 %v142, %v141
    %v147 = vpack.c.b16 %v144, %v143
    %v148 = vpack.c.b16 %v145, %v145
    %vm149 = vcmask 261120
    %v151 = vsel %vm149, %v146, 0
    %v154 = vsel %vm149, %v147, 0
    %v157 = vsel %vm149, %v148, 0
    %159 = vmatprep.subr.bf16.mxu0 0
    %160 = vmatpush1.bf16.msra.mxu0 %v134
    %161 = vmatprep.subr.bf16.mxu0 0
    %162 = vmatpush1.bf16.msra.mxu0 %v135
    %163 = vmatprep.subr.bf16.mxu0 0
    %164 = vmatpush1.bf16.msra.mxu0 0
    %165 = vmatprep.subr.bf16.mxu0 0
    %166 = vmatpush1.bf16.msra.mxu0 0
    %167 = vmatprep.subr.bf16.mxu0 0
    %168 = vmatpush1.bf16.msra.mxu0 0
    %169 = vmatprep.subr.bf16.mxu0 0
    %170 = vmatpush1.bf16.msra.mxu0 0
    %171 = vmatprep.subr.bf16.mxu0 0
    %172 = vmatpush1.bf16.msra.mxu0 0
    %173 = vmatprep.subr.bf16.mxu0 0
    %174 = vmatpush1.bf16.msra.mxu0 0
    %175 = vmatprep.subr.bf16.mxu0 0
    %176 = vmatpush1.bf16.msra.mxu0 0
    %177 = vmatprep.subr.bf16.mxu0 0
    %178 = vmatpush1.bf16.msra.mxu0 0
    %179 = vmatprep.subr.bf16.mxu0 0
    %180 = vmatpush1.bf16.msra.mxu0 0
    %181 = vmatprep.subr.bf16.mxu0 0
    %182 = vmatpush1.bf16.msra.mxu0 0
    %183 = vmatprep.subr.bf16.mxu0 0
    %184 = vmatpush1.bf16.msra.mxu0 0
    %185 = vmatprep.subr.bf16.mxu0 0
    %186 = vmatpush1.bf16.msra.mxu0 0
    %187 = vmatprep.subr.bf16.mxu0 0
    %188 = vmatpush1.bf16.msra.mxu0 0
    %189 = vmatprep.subr.bf16.mxu0 0
    %190 = vmatpush1.bf16.msra.mxu0 0
    %191 = vmatprep.mubr.bf16.mxu0 0
    %192 = vmatmul.mubr.bf16.gmra.mrb[0].mxu0 %v151
    %v193 = vpop.f32.mrb[0].mxu0
    %v194 = vadd.f32 0.0, %v193
    %v195 = vpop.f32.mrb[0].mxu0
    %v196 = vpop.f32.mrb[0].mxu0
    %v197 = vadd.f32 0.0, %v196
    %v198 = vpop.f32.mrb[0].mxu0
    %199 = vmatprep.mubr.bf16.mxu0 0
    %200 = vmatmul.mubr.bf16.gmra.mrb[0].mxu0 %v154
    %v201 = vpop.f32.mrb[0].mxu0
    %v202 = vadd.f32 0.0, %v201
    %v203 = vpop.f32.mrb[0].mxu0
    %v204 = vpop.f32.mrb[0].mxu0
    %v205 = vadd.f32 0.0, %v204
    %v206 = vpop.f32.mrb[0].mxu0
    %207 = vmatprep.mubr.bf16.mxu0 0
    %208 = vmatmul.mubr.bf16.gmra.mrb[0].mxu0 %v157
    %v209 = vpop.f32.mrb[0].mxu0
    %v210 = vadd.f32 0.0, %v209
    %v211 = vpop.f32.mrb[0].mxu0
    %v212 = vpop.f32.mrb[0].mxu0
    %v213 = vpop.f32.mrb[0].mxu0
    %214 = vdwg.mxu0
    %v215 = vpack.c.bf16 %v197, %v194
    %v216 = vpack.c.bf16 %v205, %v202
    %v217 = vpack.c.bf16 %v210, %v210
    %v218 = vld [vmem:[%s5] sm:$0xf]
    %v219 = vld [vmem:[%s6] sm:$0x1]
    %v221 = vlaneseq
    %v222 = vshrl.u32 %v221, 7
    %v223 = vsub.s32 0, %v222
    %v224 = vrot.slane %v219, %v223
    %vm226 = vcmask 64512
    %v228 = vsel %vm226, %v215, 0
    %v231 = vsel %vm226, %v216, 0
    %v234 = vsel %vm226, %v217, 0
    %vm236 = vcmask 1043456
    %v238 = vsel %vm236, %v218, 0
    %240 = vmatprep.subr.bf16.mxu0 0
    %241 = vmatpush1.bf16.msra.mxu0 %v238
    %242 = vmatprep.subr.bf16.mxu0 0
    %243 = vmatpush1.bf16.msra.mxu0 0
    %244 = vmatprep.subr.bf16.mxu0 0
    %245 = vmatpush1.bf16.msra.mxu0 0
    %246 = vmatprep.subr.bf16.mxu0 0
    %247 = vmatpush1.bf16.msra.mxu0 0
    %248 = vmatprep.subr.bf16.mxu0 0
    %249 = vmatpush1.bf16.msra.mxu0 0
    %250 = vmatprep.subr.bf16.mxu0 0
    %251 = vmatpush1.bf16.msra.mxu0 0
    %252 = vmatprep.subr.bf16.mxu0 0
    %253 = vmatpush1.bf16.msra.mxu0 0
    %254 = vmatprep.subr.bf16.mxu0 0
    %255 = vmatpush1.bf16.msra.mxu0 0
    %256 = vmatprep.subr.bf16.mxu0 0
    %257 = vmatpush1.bf16.msra.mxu0 0
    %258 = vmatprep.subr.bf16.mxu0 0
    %259 = vmatpush1.bf16.msra.mxu0 0
    %260 = vmatprep.subr.bf16.mxu0 0
    %261 = vmatpush1.bf16.msra.mxu0 0
    %262 = vmatprep.subr.bf16.mxu0 0
    %263 = vmatpush1.bf16.msra.mxu0 0
    %264 = vmatprep.subr.bf16.mxu0 0
    %265 = vmatpush1.bf16.msra.mxu0 0
    %266 = vmatprep.subr.bf16.mxu0 0
    %267 = vmatpush1.bf16.msra.mxu0 0
    %268 = vmatprep.subr.bf16.mxu0 0
    %269 = vmatpush1.bf16.msra.mxu0 0
    %270 = vmatprep.subr.bf16.mxu0 0
    %271 = vmatpush1.bf16.msra.mxu0 0
    %272 = vmatprep.mubr.bf16.mxu0 0
    %273 = vmatmul.mubr.bf16.gmra.mrb[0].mxu0 %v228
    %v274 = vpop.f32.mrb[0].mxu0
    %v275 = vadd.f32 %v224, %v274
    %v276 = vpop.f32.mrb[0].mxu0
    %v277 = vpop.f32.mrb[0].mxu0
    %v278 = vadd.f32 %v224, %v277
    %v279 = vpop.f32.mrb[0].mxu0
    %280 = vmatprep.mubr.bf16.mxu0 0
    %281 = vmatmul.mubr.bf16.gmra.mrb[0].mxu0 %v231
    %v282 = vpop.f32.mrb[0].mxu0
    %v283 = vadd.f32 %v224, %v282
    %v284 = vpop.f32.mrb[0].mxu0
    %v285 = vpop.f32.mrb[0].mxu0
    %v286 = vadd.f32 %v224, %v285
    %v287 = vpop.f32.mrb[0].mxu0
    %288 = vmatprep.mubr.bf16.mxu0 0
    %289 = vmatmul.mubr.bf16.gmra.mrb[0].mxu0 %v234
    %v290 = vpop.f32.mrb[0].mxu0
    %v291 = vadd.f32 %v224, %v290
    %v292 = vpop.f32.mrb[0].mxu0
    %v293 = vpop.f32.mrb[0].mxu0
    %v294 = vpop.f32.mrb[0].mxu0
    %295 = vdwg.mxu0
    %v296 = vtanh.pop %v275
    %v297 = vtanh.pop %v278
    %v298 = vtanh.pop %v283
    %v299 = vtanh.pop %v286
    %v300 = vtanh.pop %v291
    %v301 = vpack.c.bf16 %v297, %v296
    %v302 = vpack.c.bf16 %v299, %v298
    %v303 = vld [vmem:[%s7] sm:$0xf]
    %v304 = vld [vmem:[%s8] sm:$0x1]
    %v306 = vlaneseq
    %v307 = vshrl.u32 %v306, 7
    %v308 = vsub.s32 0, %v307
    %v309 = vrot.slane %v304, %v308
    %v312 = vsel %vm226, %v301, 0
    %v315 = vsel %vm226, %v302, 0
    %v318 = vsel %vm236, %v303, 0
    %320 = vmatprep.subr.bf16.mxu0 0
    %321 = vmatpush1.bf16.msra.mxu0 %v318
    %322 = vmatprep.subr.bf16.mxu0 0
    %323 = vmatpush1.bf16.msra.mxu0 0
    %324 = vmatprep.subr.bf16.mxu0 0
    %325 = vmatpush1.bf16.msra.mxu0 0
    %326 = vmatprep.subr.bf16.mxu0 0
    %327 = vmatpush1.bf16.msra.mxu0 0
    %328 = vmatprep.subr.bf16.mxu0 0
    %329 = vmatpush1.bf16.msra.mxu0 0
    %330 = vmatprep.subr.bf16.mxu0 0
    %331 = vmatpush1.bf16.msra.mxu0 0
    %332 = vmatprep.subr.bf16.mxu0 0
    %333 = vmatpush1.bf16.msra.mxu0 0
    %334 = vmatprep.subr.bf16.mxu0 0
    %335 = vmatpush1.bf16.msra.mxu0 0
    %336 = vmatprep.subr.bf16.mxu0 0
    %337 = vmatpush1.bf16.msra.mxu0 0
    %338 = vmatprep.subr.bf16.mxu0 0
    %339 = vmatpush1.bf16.msra.mxu0 0
    %340 = vmatprep.subr.bf16.mxu0 0
    %341 = vmatpush1.bf16.msra.mxu0 0
    %342 = vmatprep.subr.bf16.mxu0 0
    %343 = vmatpush1.bf16.msra.mxu0 0
    %344 = vmatprep.subr.bf16.mxu0 0
    %345 = vmatpush1.bf16.msra.mxu0 0
    %346 = vmatprep.subr.bf16.mxu0 0
    %347 = vmatpush1.bf16.msra.mxu0 0
    %348 = vmatprep.subr.bf16.mxu0 0
    %349 = vmatpush1.bf16.msra.mxu0 0
    %350 = vmatprep.subr.bf16.mxu0 0
    %351 = vmatpush1.bf16.msra.mxu0 0
    %352 = vmatprep.mubr.bf16.mxu0 0
    %353 = vmatmul.mubr.bf16.gmra.mrb[0].mxu0 %v312
    %v354 = vpop.f32.mrb[0].mxu0
    %v355 = vadd.f32 %v309, %v354
    %v356 = vpop.f32.mrb[0].mxu0
    %v357 = vpop.f32.mrb[0].mxu0
    %v358 = vadd.f32 %v309, %v357
    %v359 = vpop.f32.mrb[0].mxu0
    %360 = vmatprep.mubr.bf16.mxu0 0
    %361 = vmatmul.mubr.bf16.gmra.mrb[0].mxu0 %v315
    %v362 = vpop.f32.mrb[0].mxu0
    %v363 = vadd.f32 %v309, %v362
    %v364 = vpop.f32.mrb[0].mxu0
    %v365 = vpop.f32.mrb[0].mxu0
    %v366 = vadd.f32 %v309, %v365
    %v367 = vpop.f32.mrb[0].mxu0
    %368 = vdwg.mxu0
    %v369 = vtanh.pop %v355
    %v370 = vtanh.pop %v358
    %v371 = vtanh.pop %v363
    %v372 = vtanh.pop %v366
    %v373 = vld [vmem:[%s2] sm:$0xf]
    %v374 = vpack.c.bf16 %v370, %v369
    %v375 = vpack.c.bf16 %v372, %v371
    %v377 = vsel %vm149, %v373, 0
    %379 = vmatprep.subr.bf16.mxu0 0
    %380 = vmatpush1.bf16.msra.mxu0 %v374
    %381 = vmatprep.subr.bf16.mxu0 0
    %382 = vmatpush1.bf16.msra.mxu0 %v375
    %383 = vmatprep.subr.bf16.mxu0 0
    %384 = vmatpush1.bf16.msra.mxu0 0
    %385 = vmatprep.subr.bf16.mxu0 0
    %386 = vmatpush1.bf16.msra.mxu0 0
    %387 = vmatprep.subr.bf16.mxu0 0
    %388 = vmatpush1.bf16.msra.mxu0 0
    %389 = vmatprep.subr.bf16.mxu0 0
    %390 = vmatpush1.bf16.msra.mxu0 0
    %391 = vmatprep.subr.bf16.mxu0 0
    %392 = vmatpush1.bf16.msra.mxu0 0
    %393 = vmatprep.subr.bf16.mxu0 0
    %394 = vmatpush1.bf16.msra.mxu0 0
    %395 = vmatprep.subr.bf16.mxu0 0
    %396 = vmatpush1.bf16.msra.mxu0 0
    %397 = vmatprep.subr.bf16.mxu0 0
    %398 = vmatpush1.bf16.msra.mxu0 0
    %399 = vmatprep.subr.bf16.mxu0 0
    %400 = vmatpush1.bf16.msra.mxu0 0
    %401 = vmatprep.subr.bf16.mxu0 0
    %402 = vmatpush1.bf16.msra.mxu0 0
    %403 = vmatprep.subr.bf16.mxu0 0
    %404 = vmatpush1.bf16.msra.mxu0 0
    %405 = vmatprep.subr.bf16.mxu0 0
    %406 = vmatpush1.bf16.msra.mxu0 0
    %407 = vmatprep.subr.bf16.mxu0 0
    %408 = vmatpush1.bf16.msra.mxu0 0
    %409 = vmatprep.subr.bf16.mxu0 0
    %410 = vmatpush1.bf16.msra.mxu0 0
    %411 = vmatprep.mubr.bf16.mxu0 0
    %412 = vmatmul.mubr.bf16.gmra.mrb[0].mxu0 %v377
    %v413 = vpop.f32.mrb[0].mxu0
    %v414 = vadd.f32 0.0, %v413
    %v415 = vpop.f32.mrb[0].mxu0
    %v416 = vpop.f32.mrb[0].mxu0
    %v417 = vpop.f32.mrb[0].mxu0
    %418 = vdwg.mxu0
    %v419 = vpack.c.bf16 %v414, %v414
    %v420 = vld [vmem:[%s9] sm:$0xf]
    %v421 = vld [vmem:[%s10] sm:$0x1]
    %v423 = vlaneseq
    %v424 = vshrl.u32 %v423, 7
    %v425 = vsub.s32 0, %v424
    %v426 = vrot.slane %v421, %v425
    %v429 = vsel %vm226, %v419, 0
    %v432 = vsel %vm236, %v420, 0
    %434 = vmatprep.subr.bf16.mxu0 0
    %435 = vmatpush1.bf16.msra.mxu0 %v432
    %436 = vmatprep.subr.bf16.mxu0 0
    %437 = vmatpush1.bf16.msra.mxu0 0
    %438 = vmatprep.subr.bf16.mxu0 0
    %439 = vmatpush1.bf16.msra.mxu0 0
    %440 = vmatprep.subr.bf16.mxu0 0
    %441 = vmatpush1.bf16.msra.mxu0 0
    %442 = vmatprep.subr.bf16.mxu0 0
    %443 = vmatpush1.bf16.msra.mxu0 0
    %444 = vmatprep.subr.bf16.mxu0 0
    %445 = vmatpush1.bf16.msra.mxu0 0
    %446 = vmatprep.subr.bf16.mxu0 0
    %447 = vmatpush1.bf16.msra.mxu0 0
    %448 = vmatprep.subr.bf16.mxu0 0
    %449 = vmatpush1.bf16.msra.mxu0 0
    %450 = vmatprep.subr.bf16.mxu0 0
    %451 = vmatpush1.bf16.msra.mxu0 0
    %452 = vmatprep.subr.bf16.mxu0 0
    %453 = vmatpush1.bf16.msra.mxu0 0
    %454 = vmatprep.subr.bf16.mxu0 0
    %455 = vmatpush1.bf16.msra.mxu0 0
    %456 = vmatprep.subr.bf16.mxu0 0
    %457 = vmatpush1.bf16.msra.mxu0 0
    %458 = vmatprep.subr.bf16.mxu0 0
    %459 = vmatpush1.bf16.msra.mxu0 0
    %460 = vmatprep.subr.bf16.mxu0 0
    %461 = vmatpush1.bf16.msra.mxu0 0
    %462 = vmatprep.subr.bf16.mxu0 0
    %463 = vmatpush1.bf16.msra.mxu0 0
    %464 = vmatprep.subr.bf16.mxu0 0
    %465 = vmatpush1.bf16.msra.mxu0 0
    %466 = vmatprep.mubr.bf16.mxu0 0
    %467 = vmatmul.mubr.bf16.gmra.mrb[0].mxu0 %v429
    %v468 = vpop.f32.mrb[0].mxu0
    %v469 = vadd.f32 %v426, %v468
    %v470 = vpop.f32.mrb[0].mxu0
    %v471 = vpop.f32.mrb[0].mxu0
    %v472 = vpop.f32.mrb[0].mxu0
    %473 = vdwg.mxu0
    %v474 = vtanh.pop %v469
    %v475 = vlaneseq
    %v476 = vand.u32 %v475, 127
    %vm477 = vcmp.lt.s32.totalorder %v476, 8
    %v478 = vsel %vm477, %v474, %v300
    %479 = vst.msk [vmem:[#allocation2] sm:$0xff] %vm69, %v478
    // Predicated region
    $region46: #{fused_forward.1} parent=1 // pred_check
      _
    $region47: #{fused_forward.1} parent=1 // pred_check_branch
      %481 = sbr.rel (0) target = $region49
    $region48: #{fused_forward.1} parent=1 // pred_region
      %s483 = ssub.s32 128, 128
      %484 = vsyncadd [#allocation3], %s483
      %s486 = sshll.u32 [#allocation2], 4
      %s487 = int_to_ptr.vmem [resolvable:$true] %s486
      %489 = dma.vmem_to_hbm [thread:$0]  %s487, 128, %s11, [#allocation3]
    $region49: #{fused_forward.1} parent=1 // pred_fallthru
      _
    // Predicated region
    $region50: #{fused_forward.1} parent=1 // pred_check
      _
    $region51: #{fused_forward.1} parent=1 // pred_check_branch
      %491 = sbr.rel (0) target = $region53
    $region52: #{fused_forward.1} parent=1 // pred_region
      %492 = dma.done [#allocation3], 128
    $region53: #{fused_forward.1} parent=1 // pred_fallthru
      _
    %493 = vsyncpa [#allocation3], 1

</llo_original>
